<compile_context>
chip_gen: v5e
topology: v5e:2x2
jax: 0.10.0
libtpu: 0.0.40
codegen_flags: <defaults>
</compile_context>

<pallas_src>
import functools

import jax
import jax.numpy as jnp
from jax.experimental import pallas as pl
from jax.experimental.pallas import tpu as pltpu


_H_S1, _H_A1 = 200, 50      # layer-1 widths (state / action branches)
_H_S2, _H_A2 = 100, 100     # layer-2 widths (state / action branches)
_H1 = 256                   # fused layer-1 width (200 + 50 + pad, unit 255 = const 1)
_H2 = 256                   # fused layer-2 width (100 + 100 + pad, unit 255 = const 1)


def _round_up(x, m):
    return ((x + m - 1) // m) * m


def _default_ew_dtype():
    """bf16 elementwise on chips with a bf16 VALU (v6e/v7x); f32 otherwise (v5e)."""
    try:
        kind = jax.devices()[0].device_kind.lower()
    except Exception:
        return jnp.float32
    if "v6" in kind or "v7" in kind:
        return jnp.bfloat16
    return jnp.float32


def _choose_bt(batch, *, max_bt=2048, min_bt=512, target_steps=4):
    """Batch (lane) tile size.

    Big enough that per-grid-step overhead (~0.35 us) is amortized, small
    enough that large batches get several pipelined steps (and both v7x
    TensorCores).  Must be a multiple of 128 or equal the full batch.
    """
    if batch <= min_bt:
        return batch                       # single tile; block == full lane extent
    bt = _round_up(pl.cdiv(batch, target_steps), 128)
    return max(min(bt, max_bt), min_bt)


def critic_kernel(x_ref, w1_ref, w2_ref, wh_ref, out_ref, *, ew_dtype):
    """Fused critic forward for one batch tile (transposed layout).

    x_ref : [Din+1, bt]  (rows = [state | action | 1], dot dtype)
    w1_ref: [256, Din+1] block-diag(Ws1^T, Wa1^T) with bias column + const-1 unit
    w2_ref: [256, 256]   block-diag(Ws2^T, Wa2^T) with bias column + const-1 unit
    wh_ref: [256, 1]     f32 head column = [wo | wo | 0 ... | bo]
    out_ref:[1, bt]      f32 (lane-dense)
    """
    dot_t = w1_ref.dtype

    # Layer 1: both branch Linears + their biases in one block-diagonal GEMM
    # (bias folded via the constant-ones input row).
    z1 = jnp.dot(w1_ref[...], x_ref[...], preferred_element_type=jnp.float32)
    # relu in ew_dtype (bf16 on v6e/v7x; f32 on v5e) — z1 has to be in the MXU
    # dtype for the second dot anyway.
    z1 = jnp.maximum(z1.astype(ew_dtype), 0.0).astype(dot_t)

    # Layer 2: block-diagonal GEMM; biases folded via the constant-1 unit.
    z2 = jnp.dot(w2_ref[...], z1, preferred_element_type=jnp.float32)
    z2 = jnp.maximum(z2, 0.0)

    # Head: relu(x2 + y2) == x2 + y2 (both >= 0), so
    #   q[b] = sum_h z2[h, b] * wh[h]     (wh = [wo | wo | 0 ... | bo], f32)
    # Sublane reduction -> result is already lane-dense [1, bt]; no transpose,
    # no masked 1-lane stores.
    q = jnp.sum(z2 * wh_ref[...], axis=0, keepdims=True)
    out_ref[...] = q.astype(out_ref.dtype)


def init_linear(key, in_features, out_features):
    """Deterministic PyTorch-style Linear init (uniform +/- 1/sqrt(fan_in))."""
    kw, kb = jax.random.split(key)
    bound = 1.0 / jnp.sqrt(jnp.float32(in_features))
    w = jax.random.uniform(kw, (in_features, out_features), jnp.float32,
                           minval=-bound, maxval=bound)
    b = jax.random.uniform(kb, (1, out_features), jnp.float32,
                           minval=-bound, maxval=bound)
    return w, b


def make_critic_params(state_dim, num_actions, seed=0):
    key = jax.random.PRNGKey(seed)
    ks = jax.random.split(key, 5)
    ws1, bs1 = init_linear(ks[0], state_dim, _H_S1)
    ws2, bs2 = init_linear(ks[1], _H_S1, _H_S2)
    wa1, ba1 = init_linear(ks[2], num_actions, _H_A1)
    wa2, ba2 = init_linear(ks[3], _H_A1, _H_A2)
    wo, bo = init_linear(ks[4], _H_S2, 1)
    return (ws1, bs1, ws2, bs2, wa1, ba1, wa2, ba2, wo, bo)


def prepare_fused_params(params, state_dim, num_actions, dot_dtype=jnp.bfloat16):
    """Fold the five Linears (incl. ALL biases) into two block-diagonal GEMMs
    plus an f32 head column, in the transposed [features, batch] layout.

    Padding rows/columns stay exactly zero through relu; the reserved
    constant-1 hidden unit (relu(1) == 1) carries the layer-2 and head biases.
    """
    (ws1, bs1, ws2, bs2, wa1, ba1, wa2, ba2, wo, bo) = params
    din = state_dim + num_actions
    din_aug = din + 1                       # + constant-ones row (layer-1 biases)

    # w1^T : [256, Din+1]
    w1 = jnp.zeros((_H1, din_aug), jnp.float32)
    w1 = w1.at[:_H_S1, :state_dim].set(ws1.T)
    w1 = w1.at[:_H_S1, din].set(bs1.reshape(-1))
    w1 = w1.at[_H_S1:_H_S1 + _H_A1, state_dim:din].set(wa1.T)
    w1 = w1.at[_H_S1:_H_S1 + _H_A1, din].set(ba1.reshape(-1))
    w1 = w1.at[_H1 - 1, din].set(1.0)       # constant-1 hidden unit

    # w2^T : [256, 256]
    w2 = jnp.zeros((_H2, _H1), jnp.float32)
    w2 = w2.at[:_H_S2, :_H_S1].set(ws2.T)
    w2 = w2.at[:_H_S2, _H1 - 1].set(bs2.reshape(-1))
    w2 = w2.at[_H_S2:_H_S2 + _H_A2, _H_S1:_H_S1 + _H_A1].set(wa2.T)
    w2 = w2.at[_H_S2:_H_S2 + _H_A2, _H1 - 1].set(ba2.reshape(-1))
    w2 = w2.at[_H2 - 1, _H1 - 1].set(1.0)   # constant-1 unit carries the head bias

    # head column [256, 1] f32: [wo | wo | 0 ... | bo]
    wh = jnp.zeros((_H2, 1), jnp.float32)
    wh = wh.at[:_H_S2, 0].set(wo.reshape(-1))
    wh = wh.at[_H_S2:_H_S2 + _H_A2, 0].set(wo.reshape(-1))
    wh = wh.at[_H2 - 1, 0].set(bo.reshape(()))

    return (w1.astype(dot_dtype), w2.astype(dot_dtype), wh)


def critic_forward(state, action, fused_params, *, block_batch=2048, ew_dtype=None):
    """q = Critic(state, action) via a single batch-tiled Pallas kernel."""
    w1, w2, wh = fused_params
    dot_dtype = w1.dtype
    if ew_dtype is None:
        ew_dtype = _default_ew_dtype()

    batch = state.shape[0]
    din_aug = w1.shape[1]

    # Transposed, bias-augmented input [Din+1, batch]: features on sublanes,
    # batch on lanes.  Cast to the MXU dtype up front (halves the per-row HBM
    # read and removes the in-kernel cast pass).
    ones = jnp.ones((batch, 1), state.dtype)
    xT = jnp.concatenate(
        [state, action.astype(state.dtype), ones], axis=-1).T.astype(dot_dtype)

    bt = _choose_bt(batch, max_bt=block_batch)
    grid = (pl.cdiv(batch, bt),)

    def batch_map(i):       # activations / output stride over the batch (lanes)
        return (0, i)

    def resident_map(i):    # weights: constant block index -> VMEM-resident
        return (0, 0)

    out = pl.pallas_call(
        functools.partial(critic_kernel, ew_dtype=ew_dtype),
        out_shape=jax.ShapeDtypeStruct((1, batch), jnp.float32),
        grid=grid,
        in_specs=[
            pl.BlockSpec((din_aug, bt), batch_map),
            pl.BlockSpec(w1.shape, resident_map),
            pl.BlockSpec(w2.shape, resident_map),
            pl.BlockSpec(wh.shape, resident_map),
        ],
        out_specs=pl.BlockSpec((1, bt), batch_map),
        compiler_params=pltpu.CompilerParams(
            dimension_semantics=("parallel",)),   # batch tiles shard across TCs on v7x
    )(xT, w1, w2, wh)

    return out.reshape(batch, 1)


def critic_forward_ref(state, action, params):
    (ws1, bs1, ws2, bs2, wa1, ba1, wa2, ba2, wo, bo) = params
    x = jax.nn.relu(state @ ws1 + bs1)
    x = jax.nn.relu(x @ ws2 + bs2)
    y = jax.nn.relu(action @ wa1 + ba1)
    y = jax.nn.relu(y @ wa2 + ba2)
    av = jax.nn.relu(x + y)
    return av @ wo + bo


if __name__ == "__main__":
    batch = 8
    state_dim = 16
    num_actions = 4

    key = jax.random.PRNGKey(0)
    ks, ka = jax.random.split(key)
    state = jax.random.normal(ks, (batch, state_dim), jnp.float32)
    action = jax.random.normal(ka, (batch, num_actions), jnp.float32)

    params = make_critic_params(state_dim, num_actions, seed=0)
    ref = critic_forward_ref(state, action, params)

    # exact-path check (f32 MXU operands, f32 elementwise)
    fused_f32 = prepare_fused_params(params, state_dim, num_actions,
                                     dot_dtype=jnp.float32)
    out_f32 = jax.block_until_ready(
        critic_forward(state, action, fused_f32, ew_dtype=jnp.float32))
    assert out_f32.shape == (batch, 1)
    assert jnp.allclose(out_f32, ref, atol=1e-4, rtol=1e-4)

    # performance-default path (bf16 MXU operands / inputs, chip-appropriate
    # elementwise dtype, f32 accumulation and f32 head reduction)
    fused_bf16 = prepare_fused_params(params, state_dim, num_actions,
                                      dot_dtype=jnp.bfloat16)
    out_bf16 = jax.block_until_ready(critic_forward(state, action, fused_bf16))
    assert out_bf16.shape == (batch, 1)
    assert jnp.allclose(out_bf16, ref, atol=3e-2, rtol=3e-2)

    print("KERNEL_OK")
</pallas_src>

<mosaic_0001>
module attributes {stable_mosaic.version = 11 : i64} {
  func.func @critic_kernel(%arg0: i32, %arg1: memref<21x8xf32, #tpu.memory_space<vmem>>, %arg2: memref<256x21xf32, #tpu.memory_space<vmem>>, %arg3: memref<256x256xf32, #tpu.memory_space<vmem>>, %arg4: memref<256x1xf32, #tpu.memory_space<vmem>>, %arg5: memref<1x8xf32, #tpu.memory_space<vmem>>) attributes {dimension_semantics = [#tpu.dimension_semantics<parallel>], iteration_bounds = array<i64: 1>, scalar_prefetch = 0 : i64, scratch_operands = 0 : i64, tpu.core_type = #tpu.core_type<tc>, window_params = [{transform_indices = @transform_0, window_bounds = array<i64: 21, 8>}, {pipeline_mode = #tpu.pipeline_mode<synchronous>, transform_indices = @transform_1, window_bounds = array<i64: 256, 21>}, {pipeline_mode = #tpu.pipeline_mode<synchronous>, transform_indices = @transform_2, window_bounds = array<i64: 256, 256>}, {pipeline_mode = #tpu.pipeline_mode<synchronous>, transform_indices = @transform_3, window_bounds = array<i64: 256, 1>}, {transform_indices = @transform_4, window_bounds = array<i64: 1, 8>}]} {
    %c0 = arith.constant 0 : index
    %c0_0 = arith.constant 0 : index
    %0 = vector.load %arg2[%c0, %c0_0] : memref<256x21xf32, #tpu.memory_space<vmem>>, vector<256x21xf32>
    %c0_1 = arith.constant 0 : index
    %c0_2 = arith.constant 0 : index
    %1 = vector.load %arg1[%c0_1, %c0_2] : memref<21x8xf32, #tpu.memory_space<vmem>>, vector<21x8xf32>
    %cst = arith.constant dense<0.000000e+00> : vector<256x8xf32>
    %2 = tpu.matmul %0, %1, %cst {dimension_numbers = #tpu.dot_dimension_numbers<[1], [0], [0], [1], [0, 0, 1, 1], [], []>} : vector<256x21xf32>, vector<21x8xf32>, vector<256x8xf32> -> vector<256x8xf32>
    %cst_3 = arith.constant 0.000000e+00 : f32
    %3 = vector.broadcast %cst_3 : f32 to vector<256x8xf32>
    %4 = arith.maximumf %2, %3 : vector<256x8xf32>
    %c0_4 = arith.constant 0 : index
    %c0_5 = arith.constant 0 : index
    %5 = vector.load %arg3[%c0_4, %c0_5] : memref<256x256xf32, #tpu.memory_space<vmem>>, vector<256x256xf32>
    %cst_6 = arith.constant dense<0.000000e+00> : vector<256x8xf32>
    %6 = tpu.matmul %5, %4, %cst_6 {dimension_numbers = #tpu.dot_dimension_numbers<[1], [0], [0], [1], [0, 0, 1, 1], [], []>} : vector<256x256xf32>, vector<256x8xf32>, vector<256x8xf32> -> vector<256x8xf32>
    %cst_7 = arith.constant 0.000000e+00 : f32
    %7 = vector.broadcast %cst_7 : f32 to vector<256x8xf32>
    %8 = arith.maximumf %6, %7 : vector<256x8xf32>
    %c0_8 = arith.constant 0 : index
    %c0_9 = arith.constant 0 : index
    %9 = vector.load %arg4[%c0_8, %c0_9] : memref<256x1xf32, #tpu.memory_space<vmem>>, vector<256x1xf32>
    %10 = vector.broadcast %9 : vector<256x1xf32> to vector<256x8xf32>
    %11 = arith.mulf %8, %10 : vector<256x8xf32>
    %cst_10 = arith.constant dense<0.000000e+00> : vector<8xf32>
    %12 = vector.multi_reduction <add>, %11, %cst_10 [0] : vector<256x8xf32> to vector<8xf32>
    %13 = vector.shape_cast %12 : vector<8xf32> to vector<1x8xf32>
    %c0_11 = arith.constant 0 : index
    %c0_12 = arith.constant 0 : index
    %14 = vector.load %arg5[%c0_11, %c0_12] : memref<1x8xf32, #tpu.memory_space<vmem>>, vector<1x8xf32>
    tpu.vector_store %arg5[%c0_11, %c0_12], %13 {strides = array<i32>} : memref<1x8xf32, #tpu.memory_space<vmem>>, vector<1x8xf32>,
    return
  }
  func.func @transform_0(%arg0: i32) -> (i32, i32) {
    %c0_i32 = arith.constant 0 : i32
    %c0_i32_0 = arith.constant 0 : i32
    return %c0_i32, %arg0 : i32, i32
  }
  func.func @transform_1(%arg0: i32) -> (i32, i32) {
    %c0_i32 = arith.constant 0 : i32
    %c0_i32_0 = arith.constant 0 : i32
    %c0_i32_1 = arith.constant 0 : i32
    return %c0_i32, %c0_i32_0 : i32, i32
  }
  func.func @transform_2(%arg0: i32) -> (i32, i32) {
    %c0_i32 = arith.constant 0 : i32
    %c0_i32_0 = arith.constant 0 : i32
    %c0_i32_1 = arith.constant 0 : i32
    return %c0_i32, %c0_i32_0 : i32, i32
  }
  func.func @transform_3(%arg0: i32) -> (i32, i32) {
    %c0_i32 = arith.constant 0 : i32
    %c0_i32_0 = arith.constant 0 : i32
    %c0_i32_1 = arith.constant 0 : i32
    return %c0_i32, %c0_i32_0 : i32, i32
  }
  func.func @transform_4(%arg0: i32) -> (i32, i32) {
    %c0_i32 = arith.constant 0 : i32
    %c0_i32_0 = arith.constant 0 : i32
    return %c0_i32, %arg0 : i32, i32
  }
}

</mosaic_0001>

<llo_original>
// kernel: tpu_custom_call.1
$region0: #{tpu_custom_call.1}
  #allocation0 [shape = 'u32[]', space=smem, size = 0x4, offset = 0x4, fixed_abs, tag = 'smem constant byte address 0x4 - core index']
  #allocation1 [shape = 'u32[72,128]{1,0:T(1,128)}', space=vmem, size = 0x9000, scoped, tag = 'internal scratch']
  %s0 = inlined_call_operand.vmem [shape: f32[21,8], index: 0, kind: input, shape index: {}]
  %s1 = inlined_call_operand.vmem [shape: f32[256,21], index: 1, kind: input, shape index: {}]
  %s2 = inlined_call_operand.vmem [shape: f32[256,256], index: 2, kind: input, shape index: {}]
  %s3 = inlined_call_operand.vmem [shape: f32[256,1], index: 3, kind: input, shape index: {}]
  %s4 = inlined_call_operand.hbm [shape: f32[1,8], index: 4, kind: output, shape index: {}]
  %s5 = sld [smem:[#allocation0]]
  $region26: #{tpu_custom_call.1} parent=0
    _
  %s7 = ssub.s32 1, %s5
  %s8 = scalar_select 0, %s7, %s5
  $region1: #{tpu_custom_call.1} parent=0
    #allocation2 [shape = 'u8[512]{0}', space=vmem, size = 0x400, scoped, tag = 'output window, operand 0, single buffered']
    #allocation3 [shape = 's32[1]{0}', space=sflag, size = 0x4, scoped, tag = 'scoped memory for tpu_custom_call.1']
    %9 = vsyncpa [#allocation3], 0
    // Predicated region
    $region2: #{tpu_custom_call.1} parent=1 // pred_check
      _
    $region3: #{tpu_custom_call.1} parent=1 // pred_check_branch
      %11 = sbr.rel (0) target = $region5
    $region4: #{tpu_custom_call.1} parent=1 // pred_region
      _
    $region5: #{tpu_custom_call.1} parent=1 // pred_fallthru
      _
    // Predicated region
    $region6: #{tpu_custom_call.1} parent=1 // pred_check
      _
    $region7: #{tpu_custom_call.1} parent=1 // pred_check_branch
      %13 = sbr.rel (0) target = $region9
    $region8: #{tpu_custom_call.1} parent=1 // pred_region
      _
    $region9: #{tpu_custom_call.1} parent=1 // pred_fallthru
      _
    // Predicated region
    $region10: #{tpu_custom_call.1} parent=1 // pred_check
      _
    $region11: #{tpu_custom_call.1} parent=1 // pred_check_branch
      %15 = sbr.rel (0) target = $region13
    $region12: #{tpu_custom_call.1} parent=1 // pred_region
      _
    $region13: #{tpu_custom_call.1} parent=1 // pred_fallthru
      _
    // Predicated region
    $region14: #{tpu_custom_call.1} parent=1 // pred_check
      _
    $region15: #{tpu_custom_call.1} parent=1 // pred_check_branch
      %17 = sbr.rel (0) target = $region17
    $region16: #{tpu_custom_call.1} parent=1 // pred_region
      _
    $region17: #{tpu_custom_call.1} parent=1 // pred_fallthru
      _
    %v18 = vld [vmem:[%s1] sm:$0xff]
    %v19 = vld [vmem:[%s1 + $0x8] sm:$0xff]
    %v20 = vld [vmem:[%s1 + $0x10] sm:$0xff]
    %v21 = vld [vmem:[%s1 + $0x18] sm:$0xff]
    %v22 = vld [vmem:[%s1 + $0x20] sm:$0xff]
    %v23 = vld [vmem:[%s1 + $0x28] sm:$0xff]
    %v24 = vld [vmem:[%s1 + $0x30] sm:$0xff]
    %v25 = vld [vmem:[%s1 + $0x38] sm:$0xff]
    %v26 = vld [vmem:[%s1 + $0x40] sm:$0xff]
    %v27 = vld [vmem:[%s1 + $0x48] sm:$0xff]
    %v28 = vld [vmem:[%s1 + $0x50] sm:$0xff]
    %v29 = vld [vmem:[%s1 + $0x58] sm:$0xff]
    %v30 = vld [vmem:[%s1 + $0x60] sm:$0xff]
    %v31 = vld [vmem:[%s1 + $0x68] sm:$0xff]
    %v32 = vld [vmem:[%s1 + $0x70] sm:$0xff]
    %v33 = vld [vmem:[%s1 + $0x78] sm:$0xff]
    %v34 = vld [vmem:[%s1 + $0x80] sm:$0xff]
    %v35 = vld [vmem:[%s1 + $0x88] sm:$0xff]
    %v36 = vld [vmem:[%s1 + $0x90] sm:$0xff]
    %v37 = vld [vmem:[%s1 + $0x98] sm:$0xff]
    %v38 = vld [vmem:[%s1 + $0xa0] sm:$0xff]
    %v39 = vld [vmem:[%s1 + $0xa8] sm:$0xff]
    %v40 = vld [vmem:[%s1 + $0xb0] sm:$0xff]
    %v41 = vld [vmem:[%s1 + $0xb8] sm:$0xff]
    %v42 = vld [vmem:[%s1 + $0xc0] sm:$0xff]
    %v43 = vld [vmem:[%s1 + $0xc8] sm:$0xff]
    %v44 = vld [vmem:[%s1 + $0xd0] sm:$0xff]
    %v45 = vld [vmem:[%s1 + $0xd8] sm:$0xff]
    %v46 = vld [vmem:[%s1 + $0xe0] sm:$0xff]
    %v47 = vld [vmem:[%s1 + $0xe8] sm:$0xff]
    %v48 = vld [vmem:[%s1 + $0xf0] sm:$0xff]
    %v49 = vld [vmem:[%s1 + $0xf8] sm:$0xff]
    %v50 = vld [vmem:[%s0] sm:$0xff]
    %v51 = vld [vmem:[%s0 + $0x8] sm:$0xff]
    %v52 = vld [vmem:[%s0 + $0x10] sm:$0x1f]
    %vm53 = vcmask 171008
    %v55 = vsel %vm53, %v18, 0
    %v58 = vsel %vm53, %v19, 0
    %v61 = vsel %vm53, %v20, 0
    %v64 = vsel %vm53, %v21, 0
    %v67 = vsel %vm53, %v22, 0
    %v70 = vsel %vm53, %v23, 0
    %v73 = vsel %vm53, %v24, 0
    %v76 = vsel %vm53, %v25, 0
    %v79 = vsel %vm53, %v26, 0
    %v82 = vsel %vm53, %v27, 0
    %v85 = vsel %vm53, %v28, 0
    %v88 = vsel %vm53, %v29, 0
    %v91 = vsel %vm53, %v30, 0
    %v94 = vsel %vm53, %v31, 0
    %v97 = vsel %vm53, %v32, 0
    %v100 = vsel %vm53, %v33, 0
    %v103 = vsel %vm53, %v34, 0
    %v106 = vsel %vm53, %v35, 0
    %v109 = vsel %vm53, %v36, 0
    %v112 = vsel %vm53, %v37, 0
    %v115 = vsel %vm53, %v38, 0
    %v118 = vsel %vm53, %v39, 0
    %v121 = vsel %vm53, %v40, 0
    %v124 = vsel %vm53, %v41, 0
    %v127 = vsel %vm53, %v42, 0
    %v130 = vsel %vm53, %v43, 0
    %v133 = vsel %vm53, %v44, 0
    %v136 = vsel %vm53, %v45, 0
    %v139 = vsel %vm53, %v46, 0
    %v142 = vsel %vm53, %v47, 0
    %v145 = vsel %vm53, %v48, 0
    %v148 = vsel %vm53, %v49, 0
    %vm150 = vcmask 1044480
    %v152 = vsel %vm150, %v52, 0
    %154 = vmatpush.msra.mxu0 0.0
    %155 = vmatpush.msra.mxu0 0.0
    %156 = vmatpush.msra.mxu0 0.0
    %157 = vmatpush.msra.mxu0 0.0
    %158 = vmatpush.msra.mxu0 0.0
    %159 = vmatpush.msra.mxu0 0.0
    %160 = vmatpush.msra.mxu0 0.0
    %161 = vmatpush.msra.mxu0 0.0
    %162 = vmatpush.msra.mxu0 0.0
    %163 = vmatpush.msra.mxu0 0.0
    %164 = vmatpush.msra.mxu0 0.0
    %165 = vmatpush.msra.mxu0 0.0
    %166 = vmatpush.msra.mxu0 0.0
    %167 = vmatpush.msra.mxu0 %v152
    %168 = vmatpush.msra.mxu0 %v51
    %169 = vmatpush.msra.mxu0 %v50
    %170 = vmatmul.f32.gmra.mxu0 %v55
    %v171 = vpop.f32.mrf.mxu0
    %v172 = vadd.f32 0.0, %v171
    %173 = vmatmul.f32.gmra.mxu0 %v58
    %v174 = vpop.f32.mrf.mxu0
    %v175 = vadd.f32 0.0, %v174
    %176 = vmatmul.f32.gmra.mxu0 %v61
    %v177 = vpop.f32.mrf.mxu0
    %v178 = vadd.f32 0.0, %v177
    %179 = vmatmul.f32.gmra.mxu0 %v64
    %v180 = vpop.f32.mrf.mxu0
    %v181 = vadd.f32 0.0, %v180
    %182 = vmatmul.f32.gmra.mxu0 %v67
    %v183 = vpop.f32.mrf.mxu0
    %v184 = vadd.f32 0.0, %v183
    %185 = vmatmul.f32.gmra.mxu0 %v70
    %v186 = vpop.f32.mrf.mxu0
    %v187 = vadd.f32 0.0, %v186
    %188 = vmatmul.f32.gmra.mxu0 %v73
    %v189 = vpop.f32.mrf.mxu0
    %v190 = vadd.f32 0.0, %v189
    %191 = vmatmul.f32.gmra.mxu0 %v76
    %v192 = vpop.f32.mrf.mxu0
    %v193 = vadd.f32 0.0, %v192
    %194 = vmatmul.f32.gmra.mxu0 %v79
    %v195 = vpop.f32.mrf.mxu0
    %v196 = vadd.f32 0.0, %v195
    %197 = vmatmul.f32.gmra.mxu0 %v82
    %v198 = vpop.f32.mrf.mxu0
    %v199 = vadd.f32 0.0, %v198
    %200 = vmatmul.f32.gmra.mxu0 %v85
    %v201 = vpop.f32.mrf.mxu0
    %v202 = vadd.f32 0.0, %v201
    %203 = vmatmul.f32.gmra.mxu0 %v88
    %v204 = vpop.f32.mrf.mxu0
    %v205 = vadd.f32 0.0, %v204
    %206 = vmatmul.f32.gmra.mxu0 %v91
    %v207 = vpop.f32.mrf.mxu0
    %v208 = vadd.f32 0.0, %v207
    %209 = vmatmul.f32.gmra.mxu0 %v94
    %v210 = vpop.f32.mrf.mxu0
    %v211 = vadd.f32 0.0, %v210
    %212 = vmatmul.f32.gmra.mxu0 %v97
    %v213 = vpop.f32.mrf.mxu0
    %v214 = vadd.f32 0.0, %v213
    %215 = vmatmul.f32.gmra.mxu0 %v100
    %v216 = vpop.f32.mrf.mxu0
    %v217 = vadd.f32 0.0, %v216
    %218 = vmatmul.f32.gmra.mxu0 %v103
    %v219 = vpop.f32.mrf.mxu0
    %v220 = vadd.f32 0.0, %v219
    %221 = vmatmul.f32.gmra.mxu0 %v106
    %v222 = vpop.f32.mrf.mxu0
    %v223 = vadd.f32 0.0, %v222
    %224 = vmatmul.f32.gmra.mxu0 %v109
    %v225 = vpop.f32.mrf.mxu0
    %v226 = vadd.f32 0.0, %v225
    %227 = vmatmul.f32.gmra.mxu0 %v112
    %v228 = vpop.f32.mrf.mxu0
    %v229 = vadd.f32 0.0, %v228
    %230 = vmatmul.f32.gmra.mxu0 %v115
    %v231 = vpop.f32.mrf.mxu0
    %v232 = vadd.f32 0.0, %v231
    %233 = vmatmul.f32.gmra.mxu0 %v118
    %v234 = vpop.f32.mrf.mxu0
    %v235 = vadd.f32 0.0, %v234
    %236 = vmatmul.f32.gmra.mxu0 %v121
    %v237 = vpop.f32.mrf.mxu0
    %v238 = vadd.f32 0.0, %v237
    %239 = vmatmul.f32.gmra.mxu0 %v124
    %v240 = vpop.f32.mrf.mxu0
    %v241 = vadd.f32 0.0, %v240
    %242 = vmatmul.f32.gmra.mxu0 %v127
    %v243 = vpop.f32.mrf.mxu0
    %v244 = vadd.f32 0.0, %v243
    %245 = vmatmul.f32.gmra.mxu0 %v130
    %v246 = vpop.f32.mrf.mxu0
    %v247 = vadd.f32 0.0, %v246
    %248 = vmatmul.f32.gmra.mxu0 %v133
    %v249 = vpop.f32.mrf.mxu0
    %v250 = vadd.f32 0.0, %v249
    %251 = vmatmul.f32.gmra.mxu0 %v136
    %v252 = vpop.f32.mrf.mxu0
    %v253 = vadd.f32 0.0, %v252
    %254 = vmatmul.f32.gmra.mxu0 %v139
    %v255 = vpop.f32.mrf.mxu0
    %v256 = vadd.f32 0.0, %v255
    %257 = vmatmul.f32.gmra.mxu0 %v142
    %v258 = vpop.f32.mrf.mxu0
    %v259 = vadd.f32 0.0, %v258
    %260 = vmatmul.f32.gmra.mxu0 %v145
    %v261 = vpop.f32.mrf.mxu0
    %v262 = vadd.f32 0.0, %v261
    %263 = vmatmul.f32.gmra.mxu0 %v148
    %v264 = vpop.f32.mrf.mxu0
    %v265 = vadd.f32 0.0, %v264
    %266 = vdwg.mxu0
    %v267 = vmax.f32 %v172, 0.0
    %v268 = vmax.f32 %v175, 0.0
    %v269 = vmax.f32 %v178, 0.0
    %v270 = vmax.f32 %v181, 0.0
    %v271 = vmax.f32 %v184, 0.0
    %v272 = vmax.f32 %v187, 0.0
    %v273 = vmax.f32 %v190, 0.0
    %v274 = vmax.f32 %v193, 0.0
    %v275 = vmax.f32 %v196, 0.0
    %v276 = vmax.f32 %v199, 0.0
    %v277 = vmax.f32 %v202, 0.0
    %v278 = vmax.f32 %v205, 0.0
    %v279 = vmax.f32 %v208, 0.0
    %v280 = vmax.f32 %v211, 0.0
    %v281 = vmax.f32 %v214, 0.0
    %v282 = vmax.f32 %v217, 0.0
    %v283 = vmax.f32 %v220, 0.0
    %v284 = vmax.f32 %v223, 0.0
    %v285 = vmax.f32 %v226, 0.0
    %v286 = vmax.f32 %v229, 0.0
    %v287 = vmax.f32 %v232, 0.0
    %v288 = vmax.f32 %v235, 0.0
    %v289 = vmax.f32 %v238, 0.0
    %v290 = vmax.f32 %v241, 0.0
    %v291 = vmax.f32 %v244, 0.0
    %v292 = vmax.f32 %v247, 0.0
    %v293 = vmax.f32 %v250, 0.0
    %v294 = vmax.f32 %v253, 0.0
    %v295 = vmax.f32 %v256, 0.0
    %v296 = vmax.f32 %v259, 0.0
    %v297 = vmax.f32 %v262, 0.0
    %v298 = vmax.f32 %v265, 0.0
    %v299 = vld [vmem:[%s2] sm:$0xff]
    %v300 = vld [vmem:[%s2 + $0x8] sm:$0xff]
    %v301 = vld [vmem:[%s2 + $0x10] sm:$0xff]
    %v302 = vld [vmem:[%s2 + $0x18] sm:$0xff]
    %v303 = vld [vmem:[%s2 + $0x20] sm:$0xff]
    %v304 = vld [vmem:[%s2 + $0x28] sm:$0xff]
    %v305 = vld [vmem:[%s2 + $0x30] sm:$0xff]
    %v306 = vld [vmem:[%s2 + $0x38] sm:$0xff]
    %v307 = vld [vmem:[%s2 + $0x40] sm:$0xff]
    %v308 = vld [vmem:[%s2 + $0x48] sm:$0xff]
    %v309 = vld [vmem:[%s2 + $0x50] sm:$0xff]
    %v310 = vld [vmem:[%s2 + $0x58] sm:$0xff]
    %v311 = vld [vmem:[%s2 + $0x60] sm:$0xff]
    %v312 = vld [vmem:[%s2 + $0x68] sm:$0xff]
    %v313 = vld [vmem:[%s2 + $0x70] sm:$0xff]
    %v314 = vld [vmem:[%s2 + $0x78] sm:$0xff]
    %v315 = vld [vmem:[%s2 + $0x80] sm:$0xff]
    %v316 = vld [vmem:[%s2 + $0x88] sm:$0xff]
    %v317 = vld [vmem:[%s2 + $0x90] sm:$0xff]
    %v318 = vld [vmem:[%s2 + $0x98] sm:$0xff]
    %v319 = vld [vmem:[%s2 + $0xa0] sm:$0xff]
    %v320 = vld [vmem:[%s2 + $0xa8] sm:$0xff]
    %v321 = vld [vmem:[%s2 + $0xb0] sm:$0xff]
    %v322 = vld [vmem:[%s2 + $0xb8] sm:$0xff]
    %v323 = vld [vmem:[%s2 + $0xc0] sm:$0xff]
    %v324 = vld [vmem:[%s2 + $0xc8] sm:$0xff]
    %v325 = vld [vmem:[%s2 + $0xd0] sm:$0xff]
    %v326 = vld [vmem:[%s2 + $0xd8] sm:$0xff]
    %v327 = vld [vmem:[%s2 + $0xe0] sm:$0xff]
    %v328 = vld [vmem:[%s2 + $0xe8] sm:$0xff]
    %v329 = vld [vmem:[%s2 + $0xf0] sm:$0xff]
    %v330 = vld [vmem:[%s2 + $0xf8] sm:$0xff]
    %v331 = vld [vmem:[%s2 + $0x100] sm:$0xff]
    %v332 = vld [vmem:[%s2 + $0x108] sm:$0xff]
    %v333 = vld [vmem:[%s2 + $0x110] sm:$0xff]
    %v334 = vld [vmem:[%s2 + $0x118] sm:$0xff]
    %v335 = vld [vmem:[%s2 + $0x120] sm:$0xff]
    %v336 = vld [vmem:[%s2 + $0x128] sm:$0xff]
    %v337 = vld [vmem:[%s2 + $0x130] sm:$0xff]
    %v338 = vld [vmem:[%s2 + $0x138] sm:$0xff]
    %v339 = vld [vmem:[%s2 + $0x140] sm:$0xff]
    %v340 = vld [vmem:[%s2 + $0x148] sm:$0xff]
    %v341 = vld [vmem:[%s2 + $0x150] sm:$0xff]
    %v342 = vld [vmem:[%s2 + $0x158] sm:$0xff]
    %v343 = vld [vmem:[%s2 + $0x160] sm:$0xff]
    %v344 = vld [vmem:[%s2 + $0x168] sm:$0xff]
    %v345 = vld [vmem:[%s2 + $0x170] sm:$0xff]
    %v346 = vld [vmem:[%s2 + $0x178] sm:$0xff]
    %v347 = vld [vmem:[%s2 + $0x180] sm:$0xff]
    %v348 = vld [vmem:[%s2 + $0x188] sm:$0xff]
    %v349 = vld [vmem:[%s2 + $0x190] sm:$0xff]
    %v350 = vld [vmem:[%s2 + $0x198] sm:$0xff]
    %v351 = vld [vmem:[%s2 + $0x1a0] sm:$0xff]
    %v352 = vld [vmem:[%s2 + $0x1a8] sm:$0xff]
    %v353 = vld [vmem:[%s2 + $0x1b0] sm:$0xff]
    %v354 = vld [vmem:[%s2 + $0x1b8] sm:$0xff]
    %v355 = vld [vmem:[%s2 + $0x1c0] sm:$0xff]
    %v356 = vld [vmem:[%s2 + $0x1c8] sm:$0xff]
    %v357 = vld [vmem:[%s2 + $0x1d0] sm:$0xff]
    %v358 = vld [vmem:[%s2 + $0x1d8] sm:$0xff]
    %v359 = vld [vmem:[%s2 + $0x1e0] sm:$0xff]
    %v360 = vld [vmem:[%s2 + $0x1e8] sm:$0xff]
    %v361 = vld [vmem:[%s2 + $0x1f0] sm:$0xff]
    %v362 = vld [vmem:[%s2 + $0x1f8] sm:$0xff]
    %363 = vmatpush.msra.mxu0 %v282
    %364 = vmatpush.msra.mxu0 %v281
    %365 = vmatpush.msra.mxu0 %v280
    %366 = vmatpush.msra.mxu0 %v279
    %367 = vmatpush.msra.mxu0 %v278
    %368 = vmatpush.msra.mxu0 %v277
    %369 = vmatpush.msra.mxu0 %v276
    %370 = vmatpush.msra.mxu0 %v275
    %371 = vmatpush.msra.mxu0 %v274
    %372 = vmatpush.msra.mxu0 %v273
    %373 = vmatpush.msra.mxu0 %v272
    %374 = vmatpush.msra.mxu0 %v271
    %375 = vmatpush.msra.mxu0 %v270
    %376 = vmatpush.msra.mxu0 %v269
    %377 = vmatpush.msra.mxu0 %v268
    %378 = vmatpush.msra.mxu0 %v267
    %379 = vmatmul.f32.gmra.mxu0 %v299
    %v380 = vpop.f32.mrf.mxu0
    %v381 = vadd.f32 0.0, %v380
    %382 = vmatmul.f32.gmra.mxu0 %v301
    %v383 = vpop.f32.mrf.mxu0
    %v384 = vadd.f32 0.0, %v383
    %385 = vmatmul.f32.gmra.mxu0 %v303
    %v386 = vpop.f32.mrf.mxu0
    %v387 = vadd.f32 0.0, %v386
    %388 = vmatmul.f32.gmra.mxu0 %v305
    %v389 = vpop.f32.mrf.mxu0
    %v390 = vadd.f32 0.0, %v389
    %391 = vmatmul.f32.gmra.mxu0 %v307
    %v392 = vpop.f32.mrf.mxu0
    %v393 = vadd.f32 0.0, %v392
    %394 = vmatmul.f32.gmra.mxu0 %v309
    %v395 = vpop.f32.mrf.mxu0
    %v396 = vadd.f32 0.0, %v395
    %397 = vmatmul.f32.gmra.mxu0 %v311
    %v398 = vpop.f32.mrf.mxu0
    %v399 = vadd.f32 0.0, %v398
    %400 = vmatmul.f32.gmra.mxu0 %v313
    %v401 = vpop.f32.mrf.mxu0
    %v402 = vadd.f32 0.0, %v401
    %403 = vmatmul.f32.gmra.mxu0 %v315
    %v404 = vpop.f32.mrf.mxu0
    %v405 = vadd.f32 0.0, %v404
    %406 = vmatmul.f32.gmra.mxu0 %v317
    %v407 = vpop.f32.mrf.mxu0
    %v408 = vadd.f32 0.0, %v407
    %409 = vmatmul.f32.gmra.mxu0 %v319
    %v410 = vpop.f32.mrf.mxu0
    %v411 = vadd.f32 0.0, %v410
    %412 = vmatmul.f32.gmra.mxu0 %v321
    %v413 = vpop.f32.mrf.mxu0
    %v414 = vadd.f32 0.0, %v413
    %415 = vmatmul.f32.gmra.mxu0 %v323
    %v416 = vpop.f32.mrf.mxu0
    %v417 = vadd.f32 0.0, %v416
    %418 = vmatmul.f32.gmra.mxu0 %v325
    %v419 = vpop.f32.mrf.mxu0
    %v420 = vadd.f32 0.0, %v419
    %421 = vmatmul.f32.gmra.mxu0 %v327
    %v422 = vpop.f32.mrf.mxu0
    %v423 = vadd.f32 0.0, %v422
    %424 = vmatmul.f32.gmra.mxu0 %v329
    %v425 = vpop.f32.mrf.mxu0
    %v426 = vadd.f32 0.0, %v425
    %427 = vmatmul.f32.gmra.mxu0 %v331
    %v428 = vpop.f32.mrf.mxu0
    %v429 = vadd.f32 0.0, %v428
    %430 = vmatmul.f32.gmra.mxu0 %v333
    %v431 = vpop.f32.mrf.mxu0
    %v432 = vadd.f32 0.0, %v431
    %433 = vmatmul.f32.gmra.mxu0 %v335
    %v434 = vpop.f32.mrf.mxu0
    %v435 = vadd.f32 0.0, %v434
    %436 = vmatmul.f32.gmra.mxu0 %v337
    %v437 = vpop.f32.mrf.mxu0
    %v438 = vadd.f32 0.0, %v437
    %439 = vmatmul.f32.gmra.mxu0 %v339
    %v440 = vpop.f32.mrf.mxu0
    %v441 = vadd.f32 0.0, %v440
    %442 = vmatmul.f32.gmra.mxu0 %v341
    %v443 = vpop.f32.mrf.mxu0
    %v444 = vadd.f32 0.0, %v443
    %445 = vmatmul.f32.gmra.mxu0 %v343
    %v446 = vpop.f32.mrf.mxu0
    %v447 = vadd.f32 0.0, %v446
    %448 = vmatmul.f32.gmra.mxu0 %v345
    %v449 = vpop.f32.mrf.mxu0
    %v450 = vadd.f32 0.0, %v449
    %451 = vmatmul.f32.gmra.mxu0 %v347
    %v452 = vpop.f32.mrf.mxu0
    %v453 = vadd.f32 0.0, %v452
    %454 = vmatmul.f32.gmra.mxu0 %v349
    %v455 = vpop.f32.mrf.mxu0
    %v456 = vadd.f32 0.0, %v455
    %457 = vmatmul.f32.gmra.mxu0 %v351
    %v458 = vpop.f32.mrf.mxu0
    %v459 = vadd.f32 0.0, %v458
    %460 = vmatmul.f32.gmra.mxu0 %v353
    %v461 = vpop.f32.mrf.mxu0
    %v462 = vadd.f32 0.0, %v461
    %463 = vmatmul.f32.gmra.mxu0 %v355
    %v464 = vpop.f32.mrf.mxu0
    %v465 = vadd.f32 0.0, %v464
    %466 = vmatmul.f32.gmra.mxu0 %v357
    %v467 = vpop.f32.mrf.mxu0
    %v468 = vadd.f32 0.0, %v467
    %469 = vmatmul.f32.gmra.mxu0 %v359
    %v470 = vpop.f32.mrf.mxu0
    %v471 = vadd.f32 0.0, %v470
    %472 = vmatmul.f32.gmra.mxu0 %v361
    %v473 = vpop.f32.mrf.mxu0
    %v474 = vadd.f32 0.0, %v473
    %475 = vdwg.mxu0
    %476 = vmatpush.msra.mxu0 %v298
    %477 = vmatpush.msra.mxu0 %v297
    %478 = vmatpush.msra.mxu0 %v296
    %479 = vmatpush.msra.mxu0 %v295
    %480 = vmatpush.msra.mxu0 %v294
    %481 = vmatpush.msra.mxu0 %v293
    %482 = vmatpush.msra.mxu0 %v292
    %483 = vmatpush.msra.mxu0 %v291
    %484 = vmatpush.msra.mxu0 %v290
    %485 = vmatpush.msra.mxu0 %v289
    %486 = vmatpush.msra.mxu0 %v288
    %487 = vmatpush.msra.mxu0 %v287
    %488 = vmatpush.msra.mxu0 %v286
    %489 = vmatpush.msra.mxu0 %v285
    %490 = vmatpush.msra.mxu0 %v284
    %491 = vmatpush.msra.mxu0 %v283
    %492 = vmatmul.f32.gmra.mxu0 %v300
    %v493 = vpop.f32.mrf.mxu0
    %v494 = vadd.f32 %v381, %v493
    %495 = vmatmul.f32.gmra.mxu0 %v302
    %v496 = vpop.f32.mrf.mxu0
    %v497 = vadd.f32 %v384, %v496
    %498 = vmatmul.f32.gmra.mxu0 %v304
    %v499 = vpop.f32.mrf.mxu0
    %v500 = vadd.f32 %v387, %v499
    %501 = vmatmul.f32.gmra.mxu0 %v306
    %v502 = vpop.f32.mrf.mxu0
    %v503 = vadd.f32 %v390, %v502
    %504 = vmatmul.f32.gmra.mxu0 %v308
    %v505 = vpop.f32.mrf.mxu0
    %v506 = vadd.f32 %v393, %v505
    %507 = vmatmul.f32.gmra.mxu0 %v310
    %v508 = vpop.f32.mrf.mxu0
    %v509 = vadd.f32 %v396, %v508
    %510 = vmatmul.f32.gmra.mxu0 %v312
    %v511 = vpop.f32.mrf.mxu0
    %v512 = vadd.f32 %v399, %v511
    %513 = vmatmul.f32.gmra.mxu0 %v314
    %v514 = vpop.f32.mrf.mxu0
    %v515 = vadd.f32 %v402, %v514
    %516 = vmatmul.f32.gmra.mxu0 %v316
    %v517 = vpop.f32.mrf.mxu0
    %v518 = vadd.f32 %v405, %v517
    %519 = vmatmul.f32.gmra.mxu0 %v318
    %v520 = vpop.f32.mrf.mxu0
    %v521 = vadd.f32 %v408, %v520
    %522 = vmatmul.f32.gmra.mxu0 %v320
    %v523 = vpop.f32.mrf.mxu0
    %v524 = vadd.f32 %v411, %v523
    %525 = vmatmul.f32.gmra.mxu0 %v322
    %v526 = vpop.f32.mrf.mxu0
    %v527 = vadd.f32 %v414, %v526
    %528 = vmatmul.f32.gmra.mxu0 %v324
    %v529 = vpop.f32.mrf.mxu0
    %v530 = vadd.f32 %v417, %v529
    %531 = vmatmul.f32.gmra.mxu0 %v326
    %v532 = vpop.f32.mrf.mxu0
    %v533 = vadd.f32 %v420, %v532
    %534 = vmatmul.f32.gmra.mxu0 %v328
    %v535 = vpop.f32.mrf.mxu0
    %v536 = vadd.f32 %v423, %v535
    %537 = vmatmul.f32.gmra.mxu0 %v330
    %v538 = vpop.f32.mrf.mxu0
    %v539 = vadd.f32 %v426, %v538
    %540 = vmatmul.f32.gmra.mxu0 %v332
    %v541 = vpop.f32.mrf.mxu0
    %v542 = vadd.f32 %v429, %v541
    %543 = vmatmul.f32.gmra.mxu0 %v334
    %v544 = vpop.f32.mrf.mxu0
    %v545 = vadd.f32 %v432, %v544
    %546 = vmatmul.f32.gmra.mxu0 %v336
    %v547 = vpop.f32.mrf.mxu0
    %v548 = vadd.f32 %v435, %v547
    %549 = vmatmul.f32.gmra.mxu0 %v338
    %v550 = vpop.f32.mrf.mxu0
    %v551 = vadd.f32 %v438, %v550
    %552 = vmatmul.f32.gmra.mxu0 %v340
    %v553 = vpop.f32.mrf.mxu0
    %v554 = vadd.f32 %v441, %v553
    %555 = vmatmul.f32.gmra.mxu0 %v342
    %v556 = vpop.f32.mrf.mxu0
    %v557 = vadd.f32 %v444, %v556
    %558 = vmatmul.f32.gmra.mxu0 %v344
    %v559 = vpop.f32.mrf.mxu0
    %v560 = vadd.f32 %v447, %v559
    %561 = vmatmul.f32.gmra.mxu0 %v346
    %v562 = vpop.f32.mrf.mxu0
    %v563 = vadd.f32 %v450, %v562
    %564 = vmatmul.f32.gmra.mxu0 %v348
    %v565 = vpop.f32.mrf.mxu0
    %v566 = vadd.f32 %v453, %v565
    %567 = vmatmul.f32.gmra.mxu0 %v350
    %v568 = vpop.f32.mrf.mxu0
    %v569 = vadd.f32 %v456, %v568
    %570 = vmatmul.f32.gmra.mxu0 %v352
    %v571 = vpop.f32.mrf.mxu0
    %v572 = vadd.f32 %v459, %v571
    %573 = vmatmul.f32.gmra.mxu0 %v354
    %v574 = vpop.f32.mrf.mxu0
    %v575 = vadd.f32 %v462, %v574
    %576 = vmatmul.f32.gmra.mxu0 %v356
    %v577 = vpop.f32.mrf.mxu0
    %v578 = vadd.f32 %v465, %v577
    %579 = vmatmul.f32.gmra.mxu0 %v358
    %v580 = vpop.f32.mrf.mxu0
    %v581 = vadd.f32 %v468, %v580
    %582 = vmatmul.f32.gmra.mxu0 %v360
    %v583 = vpop.f32.mrf.mxu0
    %v584 = vadd.f32 %v471, %v583
    %585 = vmatmul.f32.gmra.mxu0 %v362
    %v586 = vpop.f32.mrf.mxu0
    %v587 = vadd.f32 %v474, %v586
    %588 = vdwg.mxu0
    %v589 = vmax.f32 %v494, 0.0
    %v590 = vmax.f32 %v497, 0.0
    %v591 = vmax.f32 %v500, 0.0
    %v592 = vmax.f32 %v503, 0.0
    %v593 = vmax.f32 %v506, 0.0
    %v594 = vmax.f32 %v509, 0.0
    %v595 = vmax.f32 %v512, 0.0
    %v596 = vmax.f32 %v515, 0.0
    %v597 = vmax.f32 %v518, 0.0
    %v598 = vmax.f32 %v521, 0.0
    %v599 = vmax.f32 %v524, 0.0
    %v600 = vmax.f32 %v527, 0.0
    %v601 = vmax.f32 %v530, 0.0
    %v602 = vmax.f32 %v533, 0.0
    %v603 = vmax.f32 %v536, 0.0
    %v604 = vmax.f32 %v539, 0.0
    %v605 = vmax.f32 %v542, 0.0
    %v606 = vmax.f32 %v545, 0.0
    %v607 = vmax.f32 %v548, 0.0
    %v608 = vmax.f32 %v551, 0.0
    %v609 = vmax.f32 %v554, 0.0
    %v610 = vmax.f32 %v557, 0.0
    %v611 = vmax.f32 %v560, 0.0
    %v612 = vmax.f32 %v563, 0.0
    %v613 = vmax.f32 %v566, 0.0
    %v614 = vmax.f32 %v569, 0.0
    %v615 = vmax.f32 %v572, 0.0
    %v616 = vmax.f32 %v575, 0.0
    %v617 = vmax.f32 %v578, 0.0
    %v618 = vmax.f32 %v581, 0.0
    %v619 = vmax.f32 %v584, 0.0
    %v620 = vmax.f32 %v587, 0.0
    %v621 = vld [vmem:[%s3] sm:$0xff]
    %v622 = vld [vmem:[%s3 + $0x8] sm:$0xff]
    %v623 = vld [vmem:[%s3 + $0x10] sm:$0xff]
    %v624 = vld [vmem:[%s3 + $0x18] sm:$0xff]
    %v625 = vld [vmem:[%s3 + $0x20] sm:$0xff]
    %v626 = vld [vmem:[%s3 + $0x28] sm:$0xff]
    %v627 = vld [vmem:[%s3 + $0x30] sm:$0xff]
    %v628 = vld [vmem:[%s3 + $0x38] sm:$0xff]
    %v629 = vld [vmem:[%s3 + $0x40] sm:$0xff]
    %v630 = vld [vmem:[%s3 + $0x48] sm:$0xff]
    %v631 = vld [vmem:[%s3 + $0x50] sm:$0xff]
    %v632 = vld [vmem:[%s3 + $0x58] sm:$0xff]
    %v633 = vld [vmem:[%s3 + $0x60] sm:$0xff]
    %v634 = vld [vmem:[%s3 + $0x68] sm:$0xff]
    %v635 = vld [vmem:[%s3 + $0x70] sm:$0xff]
    %v636 = vld [vmem:[%s3 + $0x78] sm:$0xff]
    %v637 = vld [vmem:[%s3 + $0x80] sm:$0xff]
    %v638 = vld [vmem:[%s3 + $0x88] sm:$0xff]
    %v639 = vld [vmem:[%s3 + $0x90] sm:$0xff]
    %v640 = vld [vmem:[%s3 + $0x98] sm:$0xff]
    %v641 = vld [vmem:[%s3 + $0xa0] sm:$0xff]
    %v642 = vld [vmem:[%s3 + $0xa8] sm:$0xff]
    %v643 = vld [vmem:[%s3 + $0xb0] sm:$0xff]
    %v644 = vld [vmem:[%s3 + $0xb8] sm:$0xff]
    %v645 = vld [vmem:[%s3 + $0xc0] sm:$0xff]
    %v646 = vld [vmem:[%s3 + $0xc8] sm:$0xff]
    %v647 = vld [vmem:[%s3 + $0xd0] sm:$0xff]
    %v648 = vld [vmem:[%s3 + $0xd8] sm:$0xff]
    %v649 = vld [vmem:[%s3 + $0xe0] sm:$0xff]
    %v650 = vld [vmem:[%s3 + $0xe8] sm:$0xff]
    %v651 = vld [vmem:[%s3 + $0xf0] sm:$0xff]
    %v652 = vld [vmem:[%s3 + $0xf8] sm:$0xff]
    %654 = vset.pattern.permute.xlu0 0
    %655 = vperm.xlu0 %654, %v621
    %v656 = vpop.permute.xlu0 %655
    %659 = vset.pattern.permute.xlu0 0
    %660 = vperm.xlu0 %659, %v622
    %v661 = vpop.permute.xlu0 %660
    %664 = vset.pattern.permute.xlu0 0
    %665 = vperm.xlu0 %664, %v623
    %v666 = vpop.permute.xlu0 %665
    %669 = vset.pattern.permute.xlu0 0
    %670 = vperm.xlu0 %669, %v624
    %v671 = vpop.permute.xlu0 %670
    %674 = vset.pattern.permute.xlu0 0
    %675 = vperm.xlu0 %674, %v625
    %v676 = vpop.permute.xlu0 %675
    %679 = vset.pattern.permute.xlu0 0
    %680 = vperm.xlu0 %679, %v626
    %v681 = vpop.permute.xlu0 %680
    %684 = vset.pattern.permute.xlu0 0
    %685 = vperm.xlu0 %684, %v627
    %v686 = vpop.permute.xlu0 %685
    %689 = vset.pattern.permute.xlu0 0
    %690 = vperm.xlu0 %689, %v628
    %v691 = vpop.permute.xlu0 %690
    %694 = vset.pattern.permute.xlu0 0
    %695 = vperm.xlu0 %694, %v629
    %v696 = vpop.permute.xlu0 %695
    %699 = vset.pattern.permute.xlu0 0
    %700 = vperm.xlu0 %699, %v630
    %v701 = vpop.permute.xlu0 %700
    %704 = vset.pattern.permute.xlu0 0
    %705 = vperm.xlu0 %704, %v631
    %v706 = vpop.permute.xlu0 %705
    %709 = vset.pattern.permute.xlu0 0
    %710 = vperm.xlu0 %709, %v632
    %v711 = vpop.permute.xlu0 %710
    %714 = vset.pattern.permute.xlu0 0
    %715 = vperm.xlu0 %714, %v633
    %v716 = vpop.permute.xlu0 %715
    %719 = vset.pattern.permute.xlu0 0
    %720 = vperm.xlu0 %719, %v634
    %v721 = vpop.permute.xlu0 %720
    %724 = vset.pattern.permute.xlu0 0
    %725 = vperm.xlu0 %724, %v635
    %v726 = vpop.permute.xlu0 %725
    %729 = vset.pattern.permute.xlu0 0
    %730 = vperm.xlu0 %729, %v636
    %v731 = vpop.permute.xlu0 %730
    %734 = vset.pattern.permute.xlu0 0
    %735 = vperm.xlu0 %734, %v637
    %v736 = vpop.permute.xlu0 %735
    %739 = vset.pattern.permute.xlu0 0
    %740 = vperm.xlu0 %739, %v638
    %v741 = vpop.permute.xlu0 %740
    %744 = vset.pattern.permute.xlu0 0
    %745 = vperm.xlu0 %744, %v639
    %v746 = vpop.permute.xlu0 %745
    %749 = vset.pattern.permute.xlu0 0
    %750 = vperm.xlu0 %749, %v640
    %v751 = vpop.permute.xlu0 %750
    %754 = vset.pattern.permute.xlu0 0
    %755 = vperm.xlu0 %754, %v641
    %v756 = vpop.permute.xlu0 %755
    %759 = vset.pattern.permute.xlu0 0
    %760 = vperm.xlu0 %759, %v642
    %v761 = vpop.permute.xlu0 %760
    %764 = vset.pattern.permute.xlu0 0
    %765 = vperm.xlu0 %764, %v643
    %v766 = vpop.permute.xlu0 %765
    %769 = vset.pattern.permute.xlu0 0
    %770 = vperm.xlu0 %769, %v644
    %v771 = vpop.permute.xlu0 %770
    %774 = vset.pattern.permute.xlu0 0
    %775 = vperm.xlu0 %774, %v645
    %v776 = vpop.permute.xlu0 %775
    %779 = vset.pattern.permute.xlu0 0
    %780 = vperm.xlu0 %779, %v646
    %v781 = vpop.permute.xlu0 %780
    %784 = vset.pattern.permute.xlu0 0
    %785 = vperm.xlu0 %784, %v647
    %v786 = vpop.permute.xlu0 %785
    %789 = vset.pattern.permute.xlu0 0
    %790 = vperm.xlu0 %789, %v648
    %v791 = vpop.permute.xlu0 %790
    %794 = vset.pattern.permute.xlu0 0
    %795 = vperm.xlu0 %794, %v649
    %v796 = vpop.permute.xlu0 %795
    %799 = vset.pattern.permute.xlu0 0
    %800 = vperm.xlu0 %799, %v650
    %v801 = vpop.permute.xlu0 %800
    %804 = vset.pattern.permute.xlu0 0
    %805 = vperm.xlu0 %804, %v651
    %v806 = vpop.permute.xlu0 %805
    %809 = vset.pattern.permute.xlu0 0
    %810 = vperm.xlu0 %809, %v652
    %v811 = vpop.permute.xlu0 %810
    %v813 = vmul.f32 %v589, %v656
    %v814 = vmul.f32 %v590, %v661
    %v815 = vmul.f32 %v591, %v666
    %v816 = vmul.f32 %v592, %v671
    %v817 = vmul.f32 %v593, %v676
    %v818 = vmul.f32 %v594, %v681
    %v819 = vmul.f32 %v595, %v686
    %v820 = vmul.f32 %v596, %v691
    %v821 = vmul.f32 %v597, %v696
    %v822 = vmul.f32 %v598, %v701
    %v823 = vmul.f32 %v599, %v706
    %v824 = vmul.f32 %v600, %v711
    %v825 = vmul.f32 %v601, %v716
    %v826 = vmul.f32 %v602, %v721
    %v827 = vmul.f32 %v603, %v726
    %v828 = vmul.f32 %v604, %v731
    %v829 = vmul.f32 %v605, %v736
    %v830 = vmul.f32 %v606, %v741
    %v831 = vmul.f32 %v607, %v746
    %v832 = vmul.f32 %v608, %v751
    %v833 = vmul.f32 %v609, %v756
    %v834 = vmul.f32 %v610, %v761
    %v835 = vmul.f32 %v611, %v766
    %v836 = vmul.f32 %v612, %v771
    %v837 = vmul.f32 %v613, %v776
    %v838 = vmul.f32 %v614, %v781
    %v839 = vmul.f32 %v615, %v786
    %v840 = vmul.f32 %v616, %v791
    %v841 = vmul.f32 %v617, %v796
    %v842 = vmul.f32 %v618, %v801
    %v843 = vmul.f32 %v619, %v806
    %v844 = vmul.f32 %v620, %v811
    %vm845 = vcmask 64512
    %v846 = vsel %vm845, %v813, 0.0
    %v847 = vsel %vm845, %v814, 0.0
    %v848 = vadd.f32 %v846, %v847
    %v849 = vsel %vm845, %v815, 0.0
    %v850 = vadd.f32 %v848, %v849
    %v851 = vsel %vm845, %v816, 0.0
    %v852 = vadd.f32 %v850, %v851
    %v853 = vsel %vm845, %v817, 0.0
    %v854 = vadd.f32 %v852, %v853
    %v855 = vsel %vm845, %v818, 0.0
    %v856 = vadd.f32 %v854, %v855
    %v857 = vsel %vm845, %v819, 0.0
    %v858 = vadd.f32 %v856, %v857
    %v859 = vsel %vm845, %v820, 0.0
    %v860 = vadd.f32 %v858, %v859
    %v861 = vsel %vm845, %v821, 0.0
    %v862 = vadd.f32 %v860, %v861
    %v863 = vsel %vm845, %v822, 0.0
    %v864 = vadd.f32 %v862, %v863
    %v865 = vsel %vm845, %v823, 0.0
    %v866 = vadd.f32 %v864, %v865
    %v867 = vsel %vm845, %v824, 0.0
    %v868 = vadd.f32 %v866, %v867
    %v869 = vsel %vm845, %v825, 0.0
    %v870 = vadd.f32 %v868, %v869
    %v871 = vsel %vm845, %v826, 0.0
    %v872 = vadd.f32 %v870, %v871
    %v873 = vsel %vm845, %v827, 0.0
    %v874 = vadd.f32 %v872, %v873
    %v875 = vsel %vm845, %v828, 0.0
    %v876 = vadd.f32 %v874, %v875
    %v877 = vsel %vm845, %v829, 0.0
    %v878 = vadd.f32 %v876, %v877
    %v879 = vsel %vm845, %v830, 0.0
    %v880 = vadd.f32 %v878, %v879
    %v881 = vsel %vm845, %v831, 0.0
    %v882 = vadd.f32 %v880, %v881
    %v883 = vsel %vm845, %v832, 0.0
    %v884 = vadd.f32 %v882, %v883
    %v885 = vsel %vm845, %v833, 0.0
    %v886 = vadd.f32 %v884, %v885
    %v887 = vsel %vm845, %v834, 0.0
    %v888 = vadd.f32 %v886, %v887
    %v889 = vsel %vm845, %v835, 0.0
    %v890 = vadd.f32 %v888, %v889
    %v891 = vsel %vm845, %v836, 0.0
    %v892 = vadd.f32 %v890, %v891
    %v893 = vsel %vm845, %v837, 0.0
    %v894 = vadd.f32 %v892, %v893
    %v895 = vsel %vm845, %v838, 0.0
    %v896 = vadd.f32 %v894, %v895
    %v897 = vsel %vm845, %v839, 0.0
    %v898 = vadd.f32 %v896, %v897
    %v899 = vsel %vm845, %v840, 0.0
    %v900 = vadd.f32 %v898, %v899
    %v901 = vsel %vm845, %v841, 0.0
    %v902 = vadd.f32 %v900, %v901
    %v903 = vsel %vm845, %v842, 0.0
    %v904 = vadd.f32 %v902, %v903
    %v905 = vsel %vm845, %v843, 0.0
    %v906 = vadd.f32 %v904, %v905
    %v907 = vsel %vm845, %v844, 0.0
    %v908 = vadd.f32 %v906, %v907
    %v909 = vrot.slane %v908, 4
    %v910 = vadd.f32 %v908, %v909
    %v911 = vrot.slane %v910, 2
    %v912 = vadd.f32 %v910, %v911
    %v913 = vrot.slane %v912, 1
    %v914 = vadd.f32 %v912, %v913
    %vm915 = vcmask 57344
    %916 = vst.msk [vmem:[#allocation2] sm:$0x1] %vm915, %v914
    // Predicated region
    $region18: #{tpu_custom_call.1} parent=1 // pred_check
      _
    $region19: #{tpu_custom_call.1} parent=1 // pred_check_branch
      %918 = sbr.rel (0) target = $region21
    $region20: #{tpu_custom_call.1} parent=1 // pred_region
      %920 = vsyncadd [#allocation3], 0
      %s922 = sshll.u32 [#allocation2], 4
      %s923 = int_to_ptr.vmem [resolvable:$true] %s922
      %s924 = sshll.u32 %s4, 4
      %s925 = int_to_ptr.hbm [resolvable:$true] %s924
      %927 = dma.vmem_to_hbm [thread:$0]  %s923, 16, %s925, [#allocation3]
    $region21: #{tpu_custom_call.1} parent=1 // pred_fallthru
      _
    // Predicated region
    $region22: #{tpu_custom_call.1} parent=1 // pred_check
      _
    $region23: #{tpu_custom_call.1} parent=1 // pred_check_branch
      %929 = sbr.rel (0) target = $region25
    $region24: #{tpu_custom_call.1} parent=1 // pred_region
      %931 = dma.done [#allocation3], 16
    $region25: #{tpu_custom_call.1} parent=1 // pred_fallthru
      _
    %932 = vsyncpa [#allocation3], 1

</llo_original>
